<compile_context>
chip_gen: v7x
topology: tpu7x:2x2x1
jax: 0.10.0
libtpu: 0.0.40
codegen_flags: <defaults>
</compile_context>

<pallas_src>
import jax
import jax.numpy as jnp
from jax.experimental import pallas as pl
from jax.experimental.pallas import tpu as pltpu

STATE_SIZE = 4       # CartPole observation dim
STATE_PAD = 8        # feature dim zero-padded to a full sublane group
H1 = 128
H2 = 256
LANE = 128
MAX_TB = 2048        # batch-tile cap (lane columns); safe for v7x 64 MiB VMEM


def _round_up(x, m):
    return ((x + m - 1) // m) * m


def critic_kernel(xT_ref, w1t_ref, b1_ref, w2t_ref, b2_ref, w3t_ref, b3_ref,
                  o_ref):
    # Activations live as [features, TB]; batch is the fast (lane) axis.
    xT = xT_ref[...].astype(jnp.bfloat16)                        # [8, TB]

    # layer 1: [128, 8] @ [8, TB] -> [128, TB]   (single tiny MXU pass)
    h1 = jnp.dot(w1t_ref[...], xT, preferred_element_type=jnp.float32)
    h1 = jnp.maximum(h1 + b1_ref[...], 0.0)

    # layer 2: [256, 128] @ [128, TB] -> [256, TB]
    h2 = jnp.dot(w2t_ref[...], h1.astype(jnp.bfloat16),
                 preferred_element_type=jnp.float32)
    h2 = jnp.maximum(h2 + b2_ref[...], 0.0)

    # layer 3: [1, 256] @ [256, TB] -> [1, TB]   (lane-dense store, no padding)
    v = jnp.dot(w3t_ref[...], h2.astype(jnp.bfloat16),
                preferred_element_type=jnp.float32)
    o_ref[...] = v + b3_ref[...]


def prep_params(params):
    """One-time parameter prep (transpose + bf16 cast). NOT per forward pass."""
    w1, b1, w2, b2, w3, b3 = params
    w1t = jnp.zeros((H1, STATE_PAD), jnp.bfloat16)
    w1t = w1t.at[:, :STATE_SIZE].set(w1.T.astype(jnp.bfloat16))   # [128, 8]
    b1c = b1.astype(jnp.float32).reshape(H1, 1)                   # [128, 1]
    w2t = w2.T.astype(jnp.bfloat16)                               # [256, 128]
    b2c = b2.astype(jnp.float32).reshape(H2, 1)                   # [256, 1]
    w3t = w3.T.astype(jnp.bfloat16)                               # [1, 256]
    b3c = b3.astype(jnp.float32).reshape(1, 1)                    # [1, 1]
    return (w1t, b1c, w2t, b2c, w3t, b3c)


def critic_forward(state, prepped):
    """Pallas path. state: [B, STATE_SIZE] f32 -> value: [B, 1] f32."""
    w1t, b1c, w2t, b2c, w3t, b3c = prepped
    B = state.shape[0]

    # Batch lives on the lane axis -> pad to a multiple of 128.
    B_lane = _round_up(max(B, 1), LANE)
    if B_lane >= 512:
        # >= 2 grid steps so v7x's two TensorCores both get a share.
        TB = min(MAX_TB, _round_up(B_lane // 2, LANE))
    else:
        TB = B_lane
    B_pad = _round_up(B_lane, TB)
    grid = (B_pad // TB,)

    # Transpose/pad outside the kernel: trivial bytes (input is 16 B/row).
    xT = jnp.pad(state.astype(jnp.float32),
                 ((0, B_pad - B), (0, STATE_PAD - STATE_SIZE))).T  # [8, B_pad]

    def const_spec(shape):
        # Same block every grid step -> weights stay VMEM resident.
        return pl.BlockSpec(shape, lambda i: (0, 0))

    flops = 2 * B_pad * (STATE_PAD * H1 + H1 * H2 + H2 * 1)
    bytes_accessed = (B_pad * (STATE_PAD * 4 + 4)                 # xT + value
                      + (H1 * STATE_PAD + H1 * H2 + H2) * 2        # bf16 weights
                      + (H1 + H2 + 1) * 4)                         # f32 biases

    out = pl.pallas_call(
        critic_kernel,
        out_shape=jax.ShapeDtypeStruct((1, B_pad), jnp.float32),
        grid=grid,
        in_specs=[
            pl.BlockSpec((STATE_PAD, TB), lambda i: (0, i)),   # states (transposed)
            const_spec((H1, STATE_PAD)),                       # W1^T
            const_spec((H1, 1)),                               # b1
            const_spec((H2, H1)),                              # W2^T
            const_spec((H2, 1)),                               # b2
            const_spec((1, H2)),                               # W3^T
            const_spec((1, 1)),                                # b3
        ],
        out_specs=pl.BlockSpec((1, TB), lambda i: (0, i)),
        compiler_params=pltpu.CompilerParams(
            dimension_semantics=("parallel",)),
        cost_estimate=pl.CostEstimate(flops=flops, transcendentals=0,
                                      bytes_accessed=bytes_accessed),
    )(xT, w1t, b1c, w2t, b2c, w3t, b3c)

    # Padded batch columns are sliced off here (lane-dense store in-kernel).
    return out[0, :B].reshape(B, 1)


def critic_value(state, prepped, params, min_pallas_batch=512):
    """Dispatcher: tiny batches are pure launch/DMA latency -> use fused XLA."""
    if state.shape[0] < min_pallas_batch:
        return critic_reference(state, params)
    return critic_forward(state, prepped)


def init_params(key):
    """Deterministic init mimicking torch.nn.Linear default U[-1/sqrt(fan_in), ...]."""
    def linear(k, fan_in, fan_out):
        kw, kb = jax.random.split(k)
        bound = 1.0 / jnp.sqrt(fan_in)
        w = jax.random.uniform(kw, (fan_in, fan_out), jnp.float32, -bound, bound)
        b = jax.random.uniform(kb, (fan_out,), jnp.float32, -bound, bound)
        return w, b

    k1, k2, k3 = jax.random.split(key, 3)
    w1, b1 = linear(k1, STATE_SIZE, H1)
    w2, b2 = linear(k2, H1, H2)
    w3, b3 = linear(k3, H2, 1)
    return (w1, b1, w2, b2, w3, b3)


def critic_reference(state, params):
    w1, b1, w2, b2, w3, b3 = params
    h = jnp.maximum(state @ w1 + b1, 0.0)
    h = jnp.maximum(h @ w2 + b2, 0.0)
    return h @ w3 + b3


if __name__ == "__main__":
    key = jax.random.PRNGKey(0)
    k_params, k_state = jax.random.split(key)

    params = init_params(k_params)
    prepped = prep_params(params)            # one-time prep (transpose + bf16)

    # Exercise both a single-tile grid (B=8 -> pad 128) and a 2-step grid
    # (B=640 -> TB=384, B_pad=768), both small shapes.
    for B in (8, 640):
        state = jax.random.normal(jax.random.fold_in(k_state, B),
                                  (B, STATE_SIZE), jnp.float32)
        value = jax.block_until_ready(critic_forward(state, prepped))
        ref = critic_reference(state, params)          # full-f32 reference
        assert value.shape == (B, 1), value.shape
        # bf16 weights/activations in the matmuls (f32 accumulation) -> small error
        assert jnp.allclose(value, ref, atol=5e-2, rtol=5e-2), (
            B, float(jnp.max(jnp.abs(value - ref))))

    print("KERNEL_OK")
</pallas_src>

<mosaic_0001>
module attributes {stable_mosaic.version = 11 : i64} {
  func.func @critic_kernel(%arg0: i32, %arg1: memref<8x128xf32, #tpu.memory_space<vmem>>, %arg2: memref<128x8xbf16, #tpu.memory_space<vmem>>, %arg3: memref<128x1xf32, #tpu.memory_space<vmem>>, %arg4: memref<256x128xbf16, #tpu.memory_space<vmem>>, %arg5: memref<256x1xf32, #tpu.memory_space<vmem>>, %arg6: memref<1x256xbf16, #tpu.memory_space<vmem>>, %arg7: memref<1x1xf32, #tpu.memory_space<vmem>>, %arg8: memref<1x128xf32, #tpu.memory_space<vmem>>) attributes {dimension_semantics = [#tpu.dimension_semantics<parallel>], iteration_bounds = array<i64: 1>, scalar_prefetch = 0 : i64, scratch_operands = 0 : i64, tpu.core_type = #tpu.core_type<tc>, window_params = [{transform_indices = @transform_0, window_bounds = array<i64: 8, 128>}, {pipeline_mode = #tpu.pipeline_mode<synchronous>, transform_indices = @transform_1, window_bounds = array<i64: 128, 8>}, {pipeline_mode = #tpu.pipeline_mode<synchronous>, transform_indices = @transform_2, window_bounds = array<i64: 128, 1>}, {pipeline_mode = #tpu.pipeline_mode<synchronous>, transform_indices = @transform_3, window_bounds = array<i64: 256, 128>}, {pipeline_mode = #tpu.pipeline_mode<synchronous>, transform_indices = @transform_4, window_bounds = array<i64: 256, 1>}, {pipeline_mode = #tpu.pipeline_mode<synchronous>, transform_indices = @transform_5, window_bounds = array<i64: 1, 256>}, {pipeline_mode = #tpu.pipeline_mode<synchronous>, transform_indices = @transform_6, window_bounds = array<i64: 1, 1>}, {transform_indices = @transform_7, window_bounds = array<i64: 1, 128>}]} {
    %c0 = arith.constant 0 : index
    %c0_0 = arith.constant 0 : index
    %0 = vector.load %arg1[%c0, %c0_0] : memref<8x128xf32, #tpu.memory_space<vmem>>, vector<8x128xf32>
    %1 = arith.truncf %0 : vector<8x128xf32> to vector<8x128xbf16>
    %c0_1 = arith.constant 0 : index
    %c0_2 = arith.constant 0 : index
    %2 = vector.load %arg2[%c0_1, %c0_2] : memref<128x8xbf16, #tpu.memory_space<vmem>>, vector<128x8xbf16>
    %cst = arith.constant dense<0.000000e+00> : vector<128x128xf32>
    %3 = tpu.matmul %2, %1, %cst {dimension_numbers = #tpu.dot_dimension_numbers<[1], [0], [0], [1], [0, 0, 1, 1], [], []>} : vector<128x8xbf16>, vector<8x128xbf16>, vector<128x128xf32> -> vector<128x128xf32>
    %c0_3 = arith.constant 0 : index
    %c0_4 = arith.constant 0 : index
    %4 = vector.load %arg3[%c0_3, %c0_4] : memref<128x1xf32, #tpu.memory_space<vmem>>, vector<128x1xf32>
    %5 = vector.broadcast %4 : vector<128x1xf32> to vector<128x128xf32>
    %6 = arith.addf %3, %5 : vector<128x128xf32>
    %cst_5 = arith.constant 0.000000e+00 : f32
    %7 = vector.broadcast %cst_5 : f32 to vector<128x128xf32>
    %8 = arith.maximumf %6, %7 : vector<128x128xf32>
    %c0_6 = arith.constant 0 : index
    %c0_7 = arith.constant 0 : index
    %9 = vector.load %arg4[%c0_6, %c0_7] : memref<256x128xbf16, #tpu.memory_space<vmem>>, vector<256x128xbf16>
    %10 = arith.truncf %8 : vector<128x128xf32> to vector<128x128xbf16>
    %cst_8 = arith.constant dense<0.000000e+00> : vector<256x128xf32>
    %11 = tpu.matmul %9, %10, %cst_8 {dimension_numbers = #tpu.dot_dimension_numbers<[1], [0], [0], [1], [0, 0, 1, 1], [], []>} : vector<256x128xbf16>, vector<128x128xbf16>, vector<256x128xf32> -> vector<256x128xf32>
    %c0_9 = arith.constant 0 : index
    %c0_10 = arith.constant 0 : index
    %12 = vector.load %arg5[%c0_9, %c0_10] : memref<256x1xf32, #tpu.memory_space<vmem>>, vector<256x1xf32>
    %13 = vector.broadcast %12 : vector<256x1xf32> to vector<256x128xf32>
    %14 = arith.addf %11, %13 : vector<256x128xf32>
    %cst_11 = arith.constant 0.000000e+00 : f32
    %15 = vector.broadcast %cst_11 : f32 to vector<256x128xf32>
    %16 = arith.maximumf %14, %15 : vector<256x128xf32>
    %c0_12 = arith.constant 0 : index
    %c0_13 = arith.constant 0 : index
    %17 = vector.load %arg6[%c0_12, %c0_13] : memref<1x256xbf16, #tpu.memory_space<vmem>>, vector<1x256xbf16>
    %18 = arith.truncf %16 : vector<256x128xf32> to vector<256x128xbf16>
    %cst_14 = arith.constant dense<0.000000e+00> : vector<1x128xf32>
    %19 = tpu.matmul %17, %18, %cst_14 {dimension_numbers = #tpu.dot_dimension_numbers<[1], [0], [0], [1], [0, 0, 1, 1], [], []>} : vector<1x256xbf16>, vector<256x128xbf16>, vector<1x128xf32> -> vector<1x128xf32>
    %c0_15 = arith.constant 0 : index
    %c0_16 = arith.constant 0 : index
    %20 = vector.load %arg7[%c0_15, %c0_16] : memref<1x1xf32, #tpu.memory_space<vmem>>, vector<1x1xf32>
    %21 = vector.broadcast %20 : vector<1x1xf32> to vector<1x128xf32>
    %22 = arith.addf %19, %21 : vector<1x128xf32>
    %c0_17 = arith.constant 0 : index
    %c0_18 = arith.constant 0 : index
    %23 = vector.load %arg8[%c0_17, %c0_18] : memref<1x128xf32, #tpu.memory_space<vmem>>, vector<1x128xf32>
    tpu.vector_store %arg8[%c0_17, %c0_18], %22 {strides = array<i32>} : memref<1x128xf32, #tpu.memory_space<vmem>>, vector<1x128xf32>,
    return
  }
  func.func @transform_0(%arg0: i32) -> (i32, i32) {
    %c0_i32 = arith.constant 0 : i32
    %c0_i32_0 = arith.constant 0 : i32
    return %c0_i32, %arg0 : i32, i32
  }
  func.func @transform_1(%arg0: i32) -> (i32, i32) {
    %c0_i32 = arith.constant 0 : i32
    %c0_i32_0 = arith.constant 0 : i32
    %c0_i32_1 = arith.constant 0 : i32
    return %c0_i32, %c0_i32_0 : i32, i32
  }
  func.func @transform_2(%arg0: i32) -> (i32, i32) {
    %c0_i32 = arith.constant 0 : i32
    %c0_i32_0 = arith.constant 0 : i32
    %c0_i32_1 = arith.constant 0 : i32
    return %c0_i32, %c0_i32_0 : i32, i32
  }
  func.func @transform_3(%arg0: i32) -> (i32, i32) {
    %c0_i32 = arith.constant 0 : i32
    %c0_i32_0 = arith.constant 0 : i32
    %c0_i32_1 = arith.constant 0 : i32
    return %c0_i32, %c0_i32_0 : i32, i32
  }
  func.func @transform_4(%arg0: i32) -> (i32, i32) {
    %c0_i32 = arith.constant 0 : i32
    %c0_i32_0 = arith.constant 0 : i32
    %c0_i32_1 = arith.constant 0 : i32
    return %c0_i32, %c0_i32_0 : i32, i32
  }
  func.func @transform_5(%arg0: i32) -> (i32, i32) {
    %c0_i32 = arith.constant 0 : i32
    %c0_i32_0 = arith.constant 0 : i32
    %c0_i32_1 = arith.constant 0 : i32
    return %c0_i32, %c0_i32_0 : i32, i32
  }
  func.func @transform_6(%arg0: i32) -> (i32, i32) {
    %c0_i32 = arith.constant 0 : i32
    %c0_i32_0 = arith.constant 0 : i32
    %c0_i32_1 = arith.constant 0 : i32
    return %c0_i32, %c0_i32_0 : i32, i32
  }
  func.func @transform_7(%arg0: i32) -> (i32, i32) {
    %c0_i32 = arith.constant 0 : i32
    %c0_i32_0 = arith.constant 0 : i32
    return %c0_i32, %arg0 : i32, i32
  }
}

</mosaic_0001>

<llo_original>
// kernel: tpu_custom_call.1
$region0: #{tpu_custom_call.1}
  #allocation0 [shape = 'u32[]', space=smem, size = 0x4, offset = 0x4, fixed_abs, tag = 'smem constant byte address 0x4 - core index']
  #allocation1 [shape = 'u32[144,128]{1,0:T(1,128)}', space=vmem, size = 0x12000, scoped, tag = 'internal scratch']
  #allocation2 [shape = 'f32[1,1]{1,0:T(1,128)S(1)}', space=vmem, size = 0x200, scoped, tag = 'scoped memory for tpu_custom_call.1']
  %s0 = inlined_call_operand.vmem [shape: f32[8,128], index: 0, kind: input, shape index: {}]
  %s1 = inlined_call_operand.vmem [shape: bf16[128,8], index: 1, kind: input, shape index: {}]
  %s2 = inlined_call_operand.vmem [shape: f32[128,1], index: 2, kind: input, shape index: {}]
  %s3 = inlined_call_operand.vmem [shape: bf16[256,128], index: 3, kind: input, shape index: {}]
  %s4 = inlined_call_operand.vmem [shape: f32[256,1], index: 4, kind: input, shape index: {}]
  %s5 = inlined_call_operand.vmem [shape: bf16[1,256], index: 5, kind: input, shape index: {}]
  %s6 = inlined_call_operand.<no memory space> [shape: f32[1,1], index: 6, kind: input, shape index: {}]
  %s7 = inlined_call_operand.hbm [shape: f32[1,128], index: 7, kind: output, shape index: {}]
  %s8 = sld [smem:[#allocation0]]
  $region38: #{tpu_custom_call.1} parent=0
    _
  %s10 = ssub.s32 1, %s8
  %s11 = scalar_select 0, %s10, %s8
  %v12 = vstv %s6
  %13 = vst [vmem:[#allocation2] sm:$0x1] %v12
  $region1: #{tpu_custom_call.1} parent=0
    #allocation3 [shape = 'u8[512]{0}', space=vmem, size = 0x400, scoped, tag = 'output window, operand 0, single buffered']
    #allocation4 [shape = 's32[1]{0}', space=sflag, size = 0x4, scoped, tag = 'scoped memory for tpu_custom_call.1']
    %14 = vsyncpa [#allocation4], 0
    // Predicated region
    $region2: #{tpu_custom_call.1} parent=1 // pred_check
      _
    $region3: #{tpu_custom_call.1} parent=1 // pred_check_branch
      %16 = sbr.rel (0) target = $region5
    $region4: #{tpu_custom_call.1} parent=1 // pred_region
      _
    $region5: #{tpu_custom_call.1} parent=1 // pred_fallthru
      _
    // Predicated region
    $region6: #{tpu_custom_call.1} parent=1 // pred_check
      _
    $region7: #{tpu_custom_call.1} parent=1 // pred_check_branch
      %18 = sbr.rel (0) target = $region9
    $region8: #{tpu_custom_call.1} parent=1 // pred_region
      _
    $region9: #{tpu_custom_call.1} parent=1 // pred_fallthru
      _
    // Predicated region
    $region10: #{tpu_custom_call.1} parent=1 // pred_check
      _
    $region11: #{tpu_custom_call.1} parent=1 // pred_check_branch
      %20 = sbr.rel (0) target = $region13
    $region12: #{tpu_custom_call.1} parent=1 // pred_region
      _
    $region13: #{tpu_custom_call.1} parent=1 // pred_fallthru
      _
    // Predicated region
    $region14: #{tpu_custom_call.1} parent=1 // pred_check
      _
    $region15: #{tpu_custom_call.1} parent=1 // pred_check_branch
      %22 = sbr.rel (0) target = $region17
    $region16: #{tpu_custom_call.1} parent=1 // pred_region
      _
    $region17: #{tpu_custom_call.1} parent=1 // pred_fallthru
      _
    // Predicated region
    $region18: #{tpu_custom_call.1} parent=1 // pred_check
      _
    $region19: #{tpu_custom_call.1} parent=1 // pred_check_branch
      %24 = sbr.rel (0) target = $region21
    $region20: #{tpu_custom_call.1} parent=1 // pred_region
      _
    $region21: #{tpu_custom_call.1} parent=1 // pred_fallthru
      _
    // Predicated region
    $region22: #{tpu_custom_call.1} parent=1 // pred_check
      _
    $region23: #{tpu_custom_call.1} parent=1 // pred_check_branch
      %26 = sbr.rel (0) target = $region25
    $region24: #{tpu_custom_call.1} parent=1 // pred_region
      _
    $region25: #{tpu_custom_call.1} parent=1 // pred_fallthru
      _
    // Predicated region
    $region26: #{tpu_custom_call.1} parent=1 // pred_check
      _
    $region27: #{tpu_custom_call.1} parent=1 // pred_check_branch
      %28 = sbr.rel (0) target = $region29
    $region28: #{tpu_custom_call.1} parent=1 // pred_region
      _
    $region29: #{tpu_custom_call.1} parent=1 // pred_fallthru
      _
    %v30 = vld [vmem:[%s0] sm:$0xff]
    %v31 = vpack.c.bf16 %v30, %v30
    %v32 = vld [vmem:[%s1] sm:$0xf]
    %v33 = vld [vmem:[%s1 + $0x4] sm:$0xf]
    %v34 = vld [vmem:[%s1 + $0x8] sm:$0xf]
    %v35 = vld [vmem:[%s1 + $0xc] sm:$0xf]
    %v36 = vld [vmem:[%s1 + $0x10] sm:$0xf]
    %v37 = vld [vmem:[%s1 + $0x14] sm:$0xf]
    %v38 = vld [vmem:[%s1 + $0x18] sm:$0xf]
    %v39 = vld [vmem:[%s1 + $0x1c] sm:$0xf]
    %v40 = vld [vmem:[%s1 + $0x20] sm:$0xf]
    %v41 = vld [vmem:[%s1 + $0x24] sm:$0xf]
    %v42 = vld [vmem:[%s1 + $0x28] sm:$0xf]
    %v43 = vld [vmem:[%s1 + $0x2c] sm:$0xf]
    %v44 = vld [vmem:[%s1 + $0x30] sm:$0xf]
    %v45 = vld [vmem:[%s1 + $0x34] sm:$0xf]
    %v46 = vld [vmem:[%s1 + $0x38] sm:$0xf]
    %v47 = vld [vmem:[%s1 + $0x3c] sm:$0xf]
    %v48 = vld [vmem:[%s2] sm:$0xff]
    %v49 = vld [vmem:[%s2 + $0x8] sm:$0xff]
    %v50 = vld [vmem:[%s2 + $0x10] sm:$0xff]
    %v51 = vld [vmem:[%s2 + $0x18] sm:$0xff]
    %v52 = vld [vmem:[%s2 + $0x20] sm:$0xff]
    %v53 = vld [vmem:[%s2 + $0x28] sm:$0xff]
    %v54 = vld [vmem:[%s2 + $0x30] sm:$0xff]
    %v55 = vld [vmem:[%s2 + $0x38] sm:$0xff]
    %v56 = vld [vmem:[%s2 + $0x40] sm:$0xff]
    %v57 = vld [vmem:[%s2 + $0x48] sm:$0xff]
    %v58 = vld [vmem:[%s2 + $0x50] sm:$0xff]
    %v59 = vld [vmem:[%s2 + $0x58] sm:$0xff]
    %v60 = vld [vmem:[%s2 + $0x60] sm:$0xff]
    %v61 = vld [vmem:[%s2 + $0x68] sm:$0xff]
    %v62 = vld [vmem:[%s2 + $0x70] sm:$0xff]
    %v63 = vld [vmem:[%s2 + $0x78] sm:$0xff]
    %65 = vset.pattern.permute.xlu0 0
    %66 = vperm.xlu0 %65, %v48
    %v67 = vpop.permute.xlu0 %66
    %70 = vset.pattern.permute.xlu0 0
    %71 = vperm.xlu0 %70, %v49
    %v72 = vpop.permute.xlu0 %71
    %75 = vset.pattern.permute.xlu0 0
    %76 = vperm.xlu0 %75, %v50
    %v77 = vpop.permute.xlu0 %76
    %80 = vset.pattern.permute.xlu0 0
    %81 = vperm.xlu0 %80, %v51
    %v82 = vpop.permute.xlu0 %81
    %85 = vset.pattern.permute.xlu0 0
    %86 = vperm.xlu0 %85, %v52
    %v87 = vpop.permute.xlu0 %86
    %90 = vset.pattern.permute.xlu0 0
    %91 = vperm.xlu0 %90, %v53
    %v92 = vpop.permute.xlu0 %91
    %95 = vset.pattern.permute.xlu0 0
    %96 = vperm.xlu0 %95, %v54
    %v97 = vpop.permute.xlu0 %96
    %100 = vset.pattern.permute.xlu0 0
    %101 = vperm.xlu0 %100, %v55
    %v102 = vpop.permute.xlu0 %101
    %105 = vset.pattern.permute.xlu0 0
    %106 = vperm.xlu0 %105, %v56
    %v107 = vpop.permute.xlu0 %106
    %110 = vset.pattern.permute.xlu0 0
    %111 = vperm.xlu0 %110, %v57
    %v112 = vpop.permute.xlu0 %111
    %115 = vset.pattern.permute.xlu0 0
    %116 = vperm.xlu0 %115, %v58
    %v117 = vpop.permute.xlu0 %116
    %120 = vset.pattern.permute.xlu0 0
    %121 = vperm.xlu0 %120, %v59
    %v122 = vpop.permute.xlu0 %121
    %125 = vset.pattern.permute.xlu0 0
    %126 = vperm.xlu0 %125, %v60
    %v127 = vpop.permute.xlu0 %126
    %130 = vset.pattern.permute.xlu0 0
    %131 = vperm.xlu0 %130, %v61
    %v132 = vpop.permute.xlu0 %131
    %135 = vset.pattern.permute.xlu0 0
    %136 = vperm.xlu0 %135, %v62
    %v137 = vpop.permute.xlu0 %136
    %140 = vset.pattern.permute.xlu0 0
    %141 = vperm.xlu0 %140, %v63
    %v142 = vpop.permute.xlu0 %141
    %v160 = vunpack.c.l.b16 %v32
    %v161 = vunpack.c.l.b16 %v33
    %v162 = vunpack.c.l.b16 %v34
    %v163 = vunpack.c.l.b16 %v35
    %v164 = vunpack.c.l.b16 %v36
    %v165 = vunpack.c.l.b16 %v37
    %v166 = vunpack.c.l.b16 %v38
    %v167 = vunpack.c.l.b16 %v39
    %v168 = vunpack.c.l.b16 %v40
    %v169 = vunpack.c.l.b16 %v41
    %v170 = vunpack.c.l.b16 %v42
    %v171 = vunpack.c.l.b16 %v43
    %v172 = vunpack.c.l.b16 %v44
    %v173 = vunpack.c.l.b16 %v45
    %v174 = vunpack.c.l.b16 %v46
    %v175 = vunpack.c.l.b16 %v47
    %v176 = vpack.c.b16 %v161, %v160
    %v177 = vpack.c.b16 %v163, %v162
    %v178 = vpack.c.b16 %v165, %v164
    %v179 = vpack.c.b16 %v167, %v166
    %v180 = vpack.c.b16 %v169, %v168
    %v181 = vpack.c.b16 %v171, %v170
    %v182 = vpack.c.b16 %v173, %v172
    %v183 = vpack.c.b16 %v175, %v174
    %vm184 = vcmask 64512
    %v186 = vsel %vm184, %v176, 0
    %v189 = vsel %vm184, %v177, 0
    %v192 = vsel %vm184, %v178, 0
    %v195 = vsel %vm184, %v179, 0
    %v198 = vsel %vm184, %v180, 0
    %v201 = vsel %vm184, %v181, 0
    %v204 = vsel %vm184, %v182, 0
    %v207 = vsel %vm184, %v183, 0
    %vm209 = vcmask 1043456
    %v211 = vsel %vm209, %v31, 0
    %213 = vmatprep.subr.bf16.mxu0 0
    %214 = vmatpush1.bf16.msra.mxu0 %v211
    %215 = vmatprep.subr.bf16.mxu0 0
    %216 = vmatpush1.bf16.msra.mxu0 0
    %217 = vmatprep.subr.bf16.mxu0 0
    %218 = vmatpush1.bf16.msra.mxu0 0
    %219 = vmatprep.subr.bf16.mxu0 0
    %220 = vmatpush1.bf16.msra.mxu0 0
    %221 = vmatprep.subr.bf16.mxu0 0
    %222 = vmatpush1.bf16.msra.mxu0 0
    %223 = vmatprep.subr.bf16.mxu0 0
    %224 = vmatpush1.bf16.msra.mxu0 0
    %225 = vmatprep.subr.bf16.mxu0 0
    %226 = vmatpush1.bf16.msra.mxu0 0
    %227 = vmatprep.subr.bf16.mxu0 0
    %228 = vmatpush1.bf16.msra.mxu0 0
    %229 = vmatprep.subr.bf16.mxu0 0
    %230 = vmatpush1.bf16.msra.mxu0 0
    %231 = vmatprep.subr.bf16.mxu0 0
    %232 = vmatpush1.bf16.msra.mxu0 0
    %233 = vmatprep.subr.bf16.mxu0 0
    %234 = vmatpush1.bf16.msra.mxu0 0
    %235 = vmatprep.subr.bf16.mxu0 0
    %236 = vmatpush1.bf16.msra.mxu0 0
    %237 = vmatprep.subr.bf16.mxu0 0
    %238 = vmatpush1.bf16.msra.mxu0 0
    %239 = vmatprep.subr.bf16.mxu0 0
    %240 = vmatpush1.bf16.msra.mxu0 0
    %241 = vmatprep.subr.bf16.mxu0 0
    %242 = vmatpush1.bf16.msra.mxu0 0
    %243 = vmatprep.subr.bf16.mxu0 0
    %244 = vmatpush1.bf16.msra.mxu0 0
    %245 = vmatprep.mubr.bf16.mxu0 0
    %246 = vmatmul.mubr.bf16.gmra.mrb[0].mxu0 %v186
    %v247 = vpop.f32.mrb[0].mxu0
    %v248 = vadd.f32 %v67, %v247
    %v249 = vpop.f32.mrb[0].mxu0
    %v250 = vpop.f32.mrb[0].mxu0
    %v251 = vadd.f32 %v72, %v250
    %v252 = vpop.f32.mrb[0].mxu0
    %253 = vmatprep.mubr.bf16.mxu0 0
    %254 = vmatmul.mubr.bf16.gmra.mrb[0].mxu0 %v189
    %v255 = vpop.f32.mrb[0].mxu0
    %v256 = vadd.f32 %v77, %v255
    %v257 = vpop.f32.mrb[0].mxu0
    %v258 = vpop.f32.mrb[0].mxu0
    %v259 = vadd.f32 %v82, %v258
    %v260 = vpop.f32.mrb[0].mxu0
    %261 = vmatprep.mubr.bf16.mxu0 0
    %262 = vmatmul.mubr.bf16.gmra.mrb[0].mxu0 %v192
    %v263 = vpop.f32.mrb[0].mxu0
    %v264 = vadd.f32 %v87, %v263
    %v265 = vpop.f32.mrb[0].mxu0
    %v266 = vpop.f32.mrb[0].mxu0
    %v267 = vadd.f32 %v92, %v266
    %v268 = vpop.f32.mrb[0].mxu0
    %269 = vmatprep.mubr.bf16.mxu0 0
    %270 = vmatmul.mubr.bf16.gmra.mrb[0].mxu0 %v195
    %v271 = vpop.f32.mrb[0].mxu0
    %v272 = vadd.f32 %v97, %v271
    %v273 = vpop.f32.mrb[0].mxu0
    %v274 = vpop.f32.mrb[0].mxu0
    %v275 = vadd.f32 %v102, %v274
    %v276 = vpop.f32.mrb[0].mxu0
    %277 = vmatprep.mubr.bf16.mxu0 0
    %278 = vmatmul.mubr.bf16.gmra.mrb[0].mxu0 %v198
    %v279 = vpop.f32.mrb[0].mxu0
    %v280 = vadd.f32 %v107, %v279
    %v281 = vpop.f32.mrb[0].mxu0
    %v282 = vpop.f32.mrb[0].mxu0
    %v283 = vadd.f32 %v112, %v282
    %v284 = vpop.f32.mrb[0].mxu0
    %285 = vmatprep.mubr.bf16.mxu0 0
    %286 = vmatmul.mubr.bf16.gmra.mrb[0].mxu0 %v201
    %v287 = vpop.f32.mrb[0].mxu0
    %v288 = vadd.f32 %v117, %v287
    %v289 = vpop.f32.mrb[0].mxu0
    %v290 = vpop.f32.mrb[0].mxu0
    %v291 = vadd.f32 %v122, %v290
    %v292 = vpop.f32.mrb[0].mxu0
    %293 = vmatprep.mubr.bf16.mxu0 0
    %294 = vmatmul.mubr.bf16.gmra.mrb[0].mxu0 %v204
    %v295 = vpop.f32.mrb[0].mxu0
    %v296 = vadd.f32 %v127, %v295
    %v297 = vpop.f32.mrb[0].mxu0
    %v298 = vpop.f32.mrb[0].mxu0
    %v299 = vadd.f32 %v132, %v298
    %v300 = vpop.f32.mrb[0].mxu0
    %301 = vmatprep.mubr.bf16.mxu0 0
    %302 = vmatmul.mubr.bf16.gmra.mrb[0].mxu0 %v207
    %v303 = vpop.f32.mrb[0].mxu0
    %v304 = vadd.f32 %v137, %v303
    %v305 = vpop.f32.mrb[0].mxu0
    %v306 = vpop.f32.mrb[0].mxu0
    %v307 = vadd.f32 %v142, %v306
    %v308 = vpop.f32.mrb[0].mxu0
    %309 = vdwg.mxu0
    %v310 = vmax.f32 %v248, 0.0
    %v311 = vmax.f32 %v251, 0.0
    %v312 = vmax.f32 %v256, 0.0
    %v313 = vmax.f32 %v259, 0.0
    %v314 = vmax.f32 %v264, 0.0
    %v315 = vmax.f32 %v267, 0.0
    %v316 = vmax.f32 %v272, 0.0
    %v317 = vmax.f32 %v275, 0.0
    %v318 = vmax.f32 %v280, 0.0
    %v319 = vmax.f32 %v283, 0.0
    %v320 = vmax.f32 %v288, 0.0
    %v321 = vmax.f32 %v291, 0.0
    %v322 = vmax.f32 %v296, 0.0
    %v323 = vmax.f32 %v299, 0.0
    %v324 = vmax.f32 %v304, 0.0
    %v325 = vmax.f32 %v307, 0.0
    %v326 = vld [vmem:[%s3] sm:$0xf]
    %v327 = vld [vmem:[%s3 + $0x4] sm:$0xf]
    %v328 = vld [vmem:[%s3 + $0x8] sm:$0xf]
    %v329 = vld [vmem:[%s3 + $0xc] sm:$0xf]
    %v330 = vld [vmem:[%s3 + $0x10] sm:$0xf]
    %v331 = vld [vmem:[%s3 + $0x14] sm:$0xf]
    %v332 = vld [vmem:[%s3 + $0x18] sm:$0xf]
    %v333 = vld [vmem:[%s3 + $0x1c] sm:$0xf]
    %v334 = vld [vmem:[%s3 + $0x20] sm:$0xf]
    %v335 = vld [vmem:[%s3 + $0x24] sm:$0xf]
    %v336 = vld [vmem:[%s3 + $0x28] sm:$0xf]
    %v337 = vld [vmem:[%s3 + $0x2c] sm:$0xf]
    %v338 = vld [vmem:[%s3 + $0x30] sm:$0xf]
    %v339 = vld [vmem:[%s3 + $0x34] sm:$0xf]
    %v340 = vld [vmem:[%s3 + $0x38] sm:$0xf]
    %v341 = vld [vmem:[%s3 + $0x3c] sm:$0xf]
    %v342 = vld [vmem:[%s3 + $0x40] sm:$0xf]
    %v343 = vld [vmem:[%s3 + $0x44] sm:$0xf]
    %v344 = vld [vmem:[%s3 + $0x48] sm:$0xf]
    %v345 = vld [vmem:[%s3 + $0x4c] sm:$0xf]
    %v346 = vld [vmem:[%s3 + $0x50] sm:$0xf]
    %v347 = vld [vmem:[%s3 + $0x54] sm:$0xf]
    %v348 = vld [vmem:[%s3 + $0x58] sm:$0xf]
    %v349 = vld [vmem:[%s3 + $0x5c] sm:$0xf]
    %v350 = vld [vmem:[%s3 + $0x60] sm:$0xf]
    %v351 = vld [vmem:[%s3 + $0x64] sm:$0xf]
    %v352 = vld [vmem:[%s3 + $0x68] sm:$0xf]
    %v353 = vld [vmem:[%s3 + $0x6c] sm:$0xf]
    %v354 = vld [vmem:[%s3 + $0x70] sm:$0xf]
    %v355 = vld [vmem:[%s3 + $0x74] sm:$0xf]
    %v356 = vld [vmem:[%s3 + $0x78] sm:$0xf]
    %v357 = vld [vmem:[%s3 + $0x7c] sm:$0xf]
    %v358 = vpack.c.bf16 %v311, %v310
    %v359 = vpack.c.bf16 %v313, %v312
    %v360 = vpack.c.bf16 %v315, %v314
    %v361 = vpack.c.bf16 %v317, %v316
    %v362 = vpack.c.bf16 %v319, %v318
    %v363 = vpack.c.bf16 %v321, %v320
    %v364 = vpack.c.bf16 %v323, %v322
    %v365 = vpack.c.bf16 %v325, %v324
    %v366 = vld [vmem:[%s4] sm:$0xff]
    %v367 = vld [vmem:[%s4 + $0x8] sm:$0xff]
    %v368 = vld [vmem:[%s4 + $0x10] sm:$0xff]
    %v369 = vld [vmem:[%s4 + $0x18] sm:$0xff]
    %v370 = vld [vmem:[%s4 + $0x20] sm:$0xff]
    %v371 = vld [vmem:[%s4 + $0x28] sm:$0xff]
    %v372 = vld [vmem:[%s4 + $0x30] sm:$0xff]
    %v373 = vld [vmem:[%s4 + $0x38] sm:$0xff]
    %v374 = vld [vmem:[%s4 + $0x40] sm:$0xff]
    %v375 = vld [vmem:[%s4 + $0x48] sm:$0xff]
    %v376 = vld [vmem:[%s4 + $0x50] sm:$0xff]
    %v377 = vld [vmem:[%s4 + $0x58] sm:$0xff]
    %v378 = vld [vmem:[%s4 + $0x60] sm:$0xff]
    %v379 = vld [vmem:[%s4 + $0x68] sm:$0xff]
    %v380 = vld [vmem:[%s4 + $0x70] sm:$0xff]
    %v381 = vld [vmem:[%s4 + $0x78] sm:$0xff]
    %v382 = vld [vmem:[%s4 + $0x80] sm:$0xff]
    %v383 = vld [vmem:[%s4 + $0x88] sm:$0xff]
    %v384 = vld [vmem:[%s4 + $0x90] sm:$0xff]
    %v385 = vld [vmem:[%s4 + $0x98] sm:$0xff]
    %v386 = vld [vmem:[%s4 + $0xa0] sm:$0xff]
    %v387 = vld [vmem:[%s4 + $0xa8] sm:$0xff]
    %v388 = vld [vmem:[%s4 + $0xb0] sm:$0xff]
    %v389 = vld [vmem:[%s4 + $0xb8] sm:$0xff]
    %v390 = vld [vmem:[%s4 + $0xc0] sm:$0xff]
    %v391 = vld [vmem:[%s4 + $0xc8] sm:$0xff]
    %v392 = vld [vmem:[%s4 + $0xd0] sm:$0xff]
    %v393 = vld [vmem:[%s4 + $0xd8] sm:$0xff]
    %v394 = vld [vmem:[%s4 + $0xe0] sm:$0xff]
    %v395 = vld [vmem:[%s4 + $0xe8] sm:$0xff]
    %v396 = vld [vmem:[%s4 + $0xf0] sm:$0xff]
    %v397 = vld [vmem:[%s4 + $0xf8] sm:$0xff]
    %399 = vset.pattern.permute.xlu0 0
    %400 = vperm.xlu0 %399, %v366
    %v401 = vpop.permute.xlu0 %400
    %404 = vset.pattern.permute.xlu0 0
    %405 = vperm.xlu0 %404, %v367
    %v406 = vpop.permute.xlu0 %405
    %409 = vset.pattern.permute.xlu0 0
    %410 = vperm.xlu0 %409, %v368
    %v411 = vpop.permute.xlu0 %410
    %414 = vset.pattern.permute.xlu0 0
    %415 = vperm.xlu0 %414, %v369
    %v416 = vpop.permute.xlu0 %415
    %419 = vset.pattern.permute.xlu0 0
    %420 = vperm.xlu0 %419, %v370
    %v421 = vpop.permute.xlu0 %420
    %424 = vset.pattern.permute.xlu0 0
    %425 = vperm.xlu0 %424, %v371
    %v426 = vpop.permute.xlu0 %425
    %429 = vset.pattern.permute.xlu0 0
    %430 = vperm.xlu0 %429, %v372
    %v431 = vpop.permute.xlu0 %430
    %434 = vset.pattern.permute.xlu0 0
    %435 = vperm.xlu0 %434, %v373
    %v436 = vpop.permute.xlu0 %435
    %439 = vset.pattern.permute.xlu0 0
    %440 = vperm.xlu0 %439, %v374
    %v441 = vpop.permute.xlu0 %440
    %444 = vset.pattern.permute.xlu0 0
    %445 = vperm.xlu0 %444, %v375
    %v446 = vpop.permute.xlu0 %445
    %449 = vset.pattern.permute.xlu0 0
    %450 = vperm.xlu0 %449, %v376
    %v451 = vpop.permute.xlu0 %450
    %454 = vset.pattern.permute.xlu0 0
    %455 = vperm.xlu0 %454, %v377
    %v456 = vpop.permute.xlu0 %455
    %459 = vset.pattern.permute.xlu0 0
    %460 = vperm.xlu0 %459, %v378
    %v461 = vpop.permute.xlu0 %460
    %464 = vset.pattern.permute.xlu0 0
    %465 = vperm.xlu0 %464, %v379
    %v466 = vpop.permute.xlu0 %465
    %469 = vset.pattern.permute.xlu0 0
    %470 = vperm.xlu0 %469, %v380
    %v471 = vpop.permute.xlu0 %470
    %474 = vset.pattern.permute.xlu0 0
    %475 = vperm.xlu0 %474, %v381
    %v476 = vpop.permute.xlu0 %475
    %479 = vset.pattern.permute.xlu0 0
    %480 = vperm.xlu0 %479, %v382
    %v481 = vpop.permute.xlu0 %480
    %484 = vset.pattern.permute.xlu0 0
    %485 = vperm.xlu0 %484, %v383
    %v486 = vpop.permute.xlu0 %485
    %489 = vset.pattern.permute.xlu0 0
    %490 = vperm.xlu0 %489, %v384
    %v491 = vpop.permute.xlu0 %490
    %494 = vset.pattern.permute.xlu0 0
    %495 = vperm.xlu0 %494, %v385
    %v496 = vpop.permute.xlu0 %495
    %499 = vset.pattern.permute.xlu0 0
    %500 = vperm.xlu0 %499, %v386
    %v501 = vpop.permute.xlu0 %500
    %504 = vset.pattern.permute.xlu0 0
    %505 = vperm.xlu0 %504, %v387
    %v506 = vpop.permute.xlu0 %505
    %509 = vset.pattern.permute.xlu0 0
    %510 = vperm.xlu0 %509, %v388
    %v511 = vpop.permute.xlu0 %510
    %514 = vset.pattern.permute.xlu0 0
    %515 = vperm.xlu0 %514, %v389
    %v516 = vpop.permute.xlu0 %515
    %519 = vset.pattern.permute.xlu0 0
    %520 = vperm.xlu0 %519, %v390
    %v521 = vpop.permute.xlu0 %520
    %524 = vset.pattern.permute.xlu0 0
    %525 = vperm.xlu0 %524, %v391
    %v526 = vpop.permute.xlu0 %525
    %529 = vset.pattern.permute.xlu0 0
    %530 = vperm.xlu0 %529, %v392
    %v531 = vpop.permute.xlu0 %530
    %534 = vset.pattern.permute.xlu0 0
    %535 = vperm.xlu0 %534, %v393
    %v536 = vpop.permute.xlu0 %535
    %539 = vset.pattern.permute.xlu0 0
    %540 = vperm.xlu0 %539, %v394
    %v541 = vpop.permute.xlu0 %540
    %544 = vset.pattern.permute.xlu0 0
    %545 = vperm.xlu0 %544, %v395
    %v546 = vpop.permute.xlu0 %545
    %549 = vset.pattern.permute.xlu0 0
    %550 = vperm.xlu0 %549, %v396
    %v551 = vpop.permute.xlu0 %550
    %554 = vset.pattern.permute.xlu0 0
    %555 = vperm.xlu0 %554, %v397
    %v556 = vpop.permute.xlu0 %555
    %v590 = vunpack.c.l.b16 %v326
    %v591 = vunpack.c.l.b16 %v327
    %v592 = vunpack.c.l.b16 %v328
    %v593 = vunpack.c.l.b16 %v329
    %v594 = vunpack.c.l.b16 %v330
    %v595 = vunpack.c.l.b16 %v331
    %v596 = vunpack.c.l.b16 %v332
    %v597 = vunpack.c.l.b16 %v333
    %v598 = vunpack.c.l.b16 %v334
    %v599 = vunpack.c.l.b16 %v335
    %v600 = vunpack.c.l.b16 %v336
    %v601 = vunpack.c.l.b16 %v337
    %v602 = vunpack.c.l.b16 %v338
    %v603 = vunpack.c.l.b16 %v339
    %v604 = vunpack.c.l.b16 %v340
    %v605 = vunpack.c.l.b16 %v341
    %v606 = vunpack.c.l.b16 %v342
    %v607 = vunpack.c.l.b16 %v343
    %v608 = vunpack.c.l.b16 %v344
    %v609 = vunpack.c.l.b16 %v345
    %v610 = vunpack.c.l.b16 %v346
    %v611 = vunpack.c.l.b16 %v347
    %v612 = vunpack.c.l.b16 %v348
    %v613 = vunpack.c.l.b16 %v349
    %v614 = vunpack.c.l.b16 %v350
    %v615 = vunpack.c.l.b16 %v351
    %v616 = vunpack.c.l.b16 %v352
    %v617 = vunpack.c.l.b16 %v353
    %v618 = vunpack.c.l.b16 %v354
    %v619 = vunpack.c.l.b16 %v355
    %v620 = vunpack.c.l.b16 %v356
    %v621 = vunpack.c.l.b16 %v357
    %v622 = vpack.c.b16 %v591, %v590
    %v623 = vpack.c.b16 %v593, %v592
    %v624 = vpack.c.b16 %v595, %v594
    %v625 = vpack.c.b16 %v597, %v596
    %v626 = vpack.c.b16 %v599, %v598
    %v627 = vpack.c.b16 %v601, %v600
    %v628 = vpack.c.b16 %v603, %v602
    %v629 = vpack.c.b16 %v605, %v604
    %v630 = vpack.c.b16 %v607, %v606
    %v631 = vpack.c.b16 %v609, %v608
    %v632 = vpack.c.b16 %v611, %v610
    %v633 = vpack.c.b16 %v613, %v612
    %v634 = vpack.c.b16 %v615, %v614
    %v635 = vpack.c.b16 %v617, %v616
    %v636 = vpack.c.b16 %v619, %v618
    %v637 = vpack.c.b16 %v621, %v620
    %654 = vmatprep.subr.bf16.mxu0 0
    %655 = vmatpush1.bf16.msra.mxu0 %v358
    %656 = vmatprep.subr.bf16.mxu0 0
    %657 = vmatpush1.bf16.msra.mxu0 %v359
    %658 = vmatprep.subr.bf16.mxu0 0
    %659 = vmatpush1.bf16.msra.mxu0 %v360
    %660 = vmatprep.subr.bf16.mxu0 0
    %661 = vmatpush1.bf16.msra.mxu0 %v361
    %662 = vmatprep.subr.bf16.mxu0 0
    %663 = vmatpush1.bf16.msra.mxu0 %v362
    %664 = vmatprep.subr.bf16.mxu0 0
    %665 = vmatpush1.bf16.msra.mxu0 %v363
    %666 = vmatprep.subr.bf16.mxu0 0
    %667 = vmatpush1.bf16.msra.mxu0 %v364
    %668 = vmatprep.subr.bf16.mxu0 0
    %669 = vmatpush1.bf16.msra.mxu0 %v365
    %670 = vmatprep.subr.bf16.mxu0 0
    %671 = vmatpush1.bf16.msra.mxu0 0
    %672 = vmatprep.subr.bf16.mxu0 0
    %673 = vmatpush1.bf16.msra.mxu0 0
    %674 = vmatprep.subr.bf16.mxu0 0
    %675 = vmatpush1.bf16.msra.mxu0 0
    %676 = vmatprep.subr.bf16.mxu0 0
    %677 = vmatpush1.bf16.msra.mxu0 0
    %678 = vmatprep.subr.bf16.mxu0 0
    %679 = vmatpush1.bf16.msra.mxu0 0
    %680 = vmatprep.subr.bf16.mxu0 0
    %681 = vmatpush1.bf16.msra.mxu0 0
    %682 = vmatprep.subr.bf16.mxu0 0
    %683 = vmatpush1.bf16.msra.mxu0 0
    %684 = vmatprep.subr.bf16.mxu0 0
    %685 = vmatpush1.bf16.msra.mxu0 0
    %686 = vmatprep.mubr.bf16.mxu0 0
    %687 = vmatmul.mubr.bf16.gmra.mrb[0].mxu0 %v622
    %v688 = vpop.f32.mrb[0].mxu0
    %v689 = vadd.f32 %v401, %v688
    %v690 = vpop.f32.mrb[0].mxu0
    %v691 = vpop.f32.mrb[0].mxu0
    %v692 = vadd.f32 %v406, %v691
    %v693 = vpop.f32.mrb[0].mxu0
    %694 = vmatprep.mubr.bf16.mxu0 0
    %695 = vmatmul.mubr.bf16.gmra.mrb[0].mxu0 %v623
    %v696 = vpop.f32.mrb[0].mxu0
    %v697 = vadd.f32 %v411, %v696
    %v698 = vpop.f32.mrb[0].mxu0
    %v699 = vpop.f32.mrb[0].mxu0
    %v700 = vadd.f32 %v416, %v699
    %v701 = vpop.f32.mrb[0].mxu0
    %702 = vmatprep.mubr.bf16.mxu0 0
    %703 = vmatmul.mubr.bf16.gmra.mrb[0].mxu0 %v624
    %v704 = vpop.f32.mrb[0].mxu0
    %v705 = vadd.f32 %v421, %v704
    %v706 = vpop.f32.mrb[0].mxu0
    %v707 = vpop.f32.mrb[0].mxu0
    %v708 = vadd.f32 %v426, %v707
    %v709 = vpop.f32.mrb[0].mxu0
    %710 = vmatprep.mubr.bf16.mxu0 0
    %711 = vmatmul.mubr.bf16.gmra.mrb[0].mxu0 %v625
    %v712 = vpop.f32.mrb[0].mxu0
    %v713 = vadd.f32 %v431, %v712
    %v714 = vpop.f32.mrb[0].mxu0
    %v715 = vpop.f32.mrb[0].mxu0
    %v716 = vadd.f32 %v436, %v715
    %v717 = vpop.f32.mrb[0].mxu0
    %718 = vmatprep.mubr.bf16.mxu0 0
    %719 = vmatmul.mubr.bf16.gmra.mrb[0].mxu0 %v626
    %v720 = vpop.f32.mrb[0].mxu0
    %v721 = vadd.f32 %v441, %v720
    %v722 = vpop.f32.mrb[0].mxu0
    %v723 = vpop.f32.mrb[0].mxu0
    %v724 = vadd.f32 %v446, %v723
    %v725 = vpop.f32.mrb[0].mxu0
    %726 = vmatprep.mubr.bf16.mxu0 0
    %727 = vmatmul.mubr.bf16.gmra.mrb[0].mxu0 %v627
    %v728 = vpop.f32.mrb[0].mxu0
    %v729 = vadd.f32 %v451, %v728
    %v730 = vpop.f32.mrb[0].mxu0
    %v731 = vpop.f32.mrb[0].mxu0
    %v732 = vadd.f32 %v456, %v731
    %v733 = vpop.f32.mrb[0].mxu0
    %734 = vmatprep.mubr.bf16.mxu0 0
    %735 = vmatmul.mubr.bf16.gmra.mrb[0].mxu0 %v628
    %v736 = vpop.f32.mrb[0].mxu0
    %v737 = vadd.f32 %v461, %v736
    %v738 = vpop.f32.mrb[0].mxu0
    %v739 = vpop.f32.mrb[0].mxu0
    %v740 = vadd.f32 %v466, %v739
    %v741 = vpop.f32.mrb[0].mxu0
    %742 = vmatprep.mubr.bf16.mxu0 0
    %743 = vmatmul.mubr.bf16.gmra.mrb[0].mxu0 %v629
    %v744 = vpop.f32.mrb[0].mxu0
    %v745 = vadd.f32 %v471, %v744
    %v746 = vpop.f32.mrb[0].mxu0
    %v747 = vpop.f32.mrb[0].mxu0
    %v748 = vadd.f32 %v476, %v747
    %v749 = vpop.f32.mrb[0].mxu0
    %750 = vmatprep.mubr.bf16.mxu0 0
    %751 = vmatmul.mubr.bf16.gmra.mrb[0].mxu0 %v630
    %v752 = vpop.f32.mrb[0].mxu0
    %v753 = vadd.f32 %v481, %v752
    %v754 = vpop.f32.mrb[0].mxu0
    %v755 = vpop.f32.mrb[0].mxu0
    %v756 = vadd.f32 %v486, %v755
    %v757 = vpop.f32.mrb[0].mxu0
    %758 = vmatprep.mubr.bf16.mxu0 0
    %759 = vmatmul.mubr.bf16.gmra.mrb[0].mxu0 %v631
    %v760 = vpop.f32.mrb[0].mxu0
    %v761 = vadd.f32 %v491, %v760
    %v762 = vpop.f32.mrb[0].mxu0
    %v763 = vpop.f32.mrb[0].mxu0
    %v764 = vadd.f32 %v496, %v763
    %v765 = vpop.f32.mrb[0].mxu0
    %766 = vmatprep.mubr.bf16.mxu0 0
    %767 = vmatmul.mubr.bf16.gmra.mrb[0].mxu0 %v632
    %v768 = vpop.f32.mrb[0].mxu0
    %v769 = vadd.f32 %v501, %v768
    %v770 = vpop.f32.mrb[0].mxu0
    %v771 = vpop.f32.mrb[0].mxu0
    %v772 = vadd.f32 %v506, %v771
    %v773 = vpop.f32.mrb[0].mxu0
    %774 = vmatprep.mubr.bf16.mxu0 0
    %775 = vmatmul.mubr.bf16.gmra.mrb[0].mxu0 %v633
    %v776 = vpop.f32.mrb[0].mxu0
    %v777 = vadd.f32 %v511, %v776
    %v778 = vpop.f32.mrb[0].mxu0
    %v779 = vpop.f32.mrb[0].mxu0
    %v780 = vadd.f32 %v516, %v779
    %v781 = vpop.f32.mrb[0].mxu0
    %782 = vmatprep.mubr.bf16.mxu0 0
    %783 = vmatmul.mubr.bf16.gmra.mrb[0].mxu0 %v634
    %v784 = vpop.f32.mrb[0].mxu0
    %v785 = vadd.f32 %v521, %v784
    %v786 = vpop.f32.mrb[0].mxu0
    %v787 = vpop.f32.mrb[0].mxu0
    %v788 = vadd.f32 %v526, %v787
    %v789 = vpop.f32.mrb[0].mxu0
    %790 = vmatprep.mubr.bf16.mxu0 0
    %791 = vmatmul.mubr.bf16.gmra.mrb[0].mxu0 %v635
    %v792 = vpop.f32.mrb[0].mxu0
    %v793 = vadd.f32 %v531, %v792
    %v794 = vpop.f32.mrb[0].mxu0
    %v795 = vpop.f32.mrb[0].mxu0
    %v796 = vadd.f32 %v536, %v795
    %v797 = vpop.f32.mrb[0].mxu0
    %798 = vmatprep.mubr.bf16.mxu0 0
    %799 = vmatmul.mubr.bf16.gmra.mrb[0].mxu0 %v636
    %v800 = vpop.f32.mrb[0].mxu0
    %v801 = vadd.f32 %v541, %v800
    %v802 = vpop.f32.mrb[0].mxu0
    %v803 = vpop.f32.mrb[0].mxu0
    %v804 = vadd.f32 %v546, %v803
    %v805 = vpop.f32.mrb[0].mxu0
    %806 = vmatprep.mubr.bf16.mxu0 0
    %807 = vmatmul.mubr.bf16.gmra.mrb[0].mxu0 %v637
    %v808 = vpop.f32.mrb[0].mxu0
    %v809 = vadd.f32 %v551, %v808
    %v810 = vpop.f32.mrb[0].mxu0
    %v811 = vpop.f32.mrb[0].mxu0
    %v812 = vadd.f32 %v556, %v811
    %v813 = vpop.f32.mrb[0].mxu0
    %814 = vdwg.mxu0
    %v815 = vmax.f32 %v689, 0.0
    %v816 = vmax.f32 %v692, 0.0
    %v817 = vmax.f32 %v697, 0.0
    %v818 = vmax.f32 %v700, 0.0
    %v819 = vmax.f32 %v705, 0.0
    %v820 = vmax.f32 %v708, 0.0
    %v821 = vmax.f32 %v713, 0.0
    %v822 = vmax.f32 %v716, 0.0
    %v823 = vmax.f32 %v721, 0.0
    %v824 = vmax.f32 %v724, 0.0
    %v825 = vmax.f32 %v729, 0.0
    %v826 = vmax.f32 %v732, 0.0
    %v827 = vmax.f32 %v737, 0.0
    %v828 = vmax.f32 %v740, 0.0
    %v829 = vmax.f32 %v745, 0.0
    %v830 = vmax.f32 %v748, 0.0
    %v831 = vmax.f32 %v753, 0.0
    %v832 = vmax.f32 %v756, 0.0
    %v833 = vmax.f32 %v761, 0.0
    %v834 = vmax.f32 %v764, 0.0
    %v835 = vmax.f32 %v769, 0.0
    %v836 = vmax.f32 %v772, 0.0
    %v837 = vmax.f32 %v777, 0.0
    %v838 = vmax.f32 %v780, 0.0
    %v839 = vmax.f32 %v785, 0.0
    %v840 = vmax.f32 %v788, 0.0
    %v841 = vmax.f32 %v793, 0.0
    %v842 = vmax.f32 %v796, 0.0
    %v843 = vmax.f32 %v801, 0.0
    %v844 = vmax.f32 %v804, 0.0
    %v845 = vmax.f32 %v809, 0.0
    %v846 = vmax.f32 %v812, 0.0
    %v847 = vld [vmem:[%s5] sm:$0x3]
    %v848 = vpack.c.bf16 %v816, %v815
    %v849 = vpack.c.bf16 %v818, %v817
    %v850 = vpack.c.bf16 %v820, %v819
    %v851 = vpack.c.bf16 %v822, %v821
    %v852 = vpack.c.bf16 %v824, %v823
    %v853 = vpack.c.bf16 %v826, %v825
    %v854 = vpack.c.bf16 %v828, %v827
    %v855 = vpack.c.bf16 %v830, %v829
    %v856 = vpack.c.bf16 %v832, %v831
    %v857 = vpack.c.bf16 %v834, %v833
    %v858 = vpack.c.bf16 %v836, %v835
    %v859 = vpack.c.bf16 %v838, %v837
    %v860 = vpack.c.bf16 %v840, %v839
    %v861 = vpack.c.bf16 %v842, %v841
    %v862 = vpack.c.bf16 %v844, %v843
    %v863 = vpack.c.bf16 %v846, %v845
    %v864 = vld [vmem:[#allocation2] sm:$0x1]
    %866 = vset.pattern.permute.xlu0 0
    %867 = vperm.xlu0 %866, %v864
    %v868 = vpop.permute.xlu0 %867
    %v870 = vlaneseq
    %v871 = vshrl.u32 %v870, 7
    %v872 = vsub.s32 0, %v871
    %v873 = vrot.slane %v868, %v872
    %v876 = vunpack.c.l.s4 1966171168
    %v877 = vunpack.c.0.s8 %v876
    %v878 = vlaneseq
    %v879 = vshrl.u32 %v878, 7
    %v880 = vsub.s32 %v877, %v879
    %v881 = vrot.slane %v847, %v880
    %v882 = vcombine.high %v881, %v881
    %v884 = vunpack.c.l.s4 1966171168
    %v885 = vunpack.c.0.s8 %v884
    %v886 = vlaneseq
    %v887 = vshrl.u32 %v886, 7
    %v888 = vsub.s32 %v885, %v887
    %v889 = vrot.slane %v881, %v888
    %v891 = vunpack.c.l.s4 1966171168
    %v892 = vunpack.c.0.s8 %v891
    %v893 = vlaneseq
    %v894 = vshrl.u32 %v893, 7
    %v895 = vsub.s32 %v892, %v894
    %v896 = vrot.slane %v882, %v895
    %899 = vmatprep.subr.bf16.mxu0 0
    %900 = vmatpush1.bf16.msra.mxu0 %v848
    %901 = vmatprep.subr.bf16.mxu0 0
    %902 = vmatpush1.bf16.msra.mxu0 %v849
    %903 = vmatprep.subr.bf16.mxu0 0
    %904 = vmatpush1.bf16.msra.mxu0 %v850
    %905 = vmatprep.subr.bf16.mxu0 0
    %906 = vmatpush1.bf16.msra.mxu0 %v851
    %907 = vmatprep.subr.bf16.mxu0 0
    %908 = vmatpush1.bf16.msra.mxu0 %v852
    %909 = vmatprep.subr.bf16.mxu0 0
    %910 = vmatpush1.bf16.msra.mxu0 %v853
    %911 = vmatprep.subr.bf16.mxu0 0
    %912 = vmatpush1.bf16.msra.mxu0 %v854
    %913 = vmatprep.subr.bf16.mxu0 0
    %914 = vmatpush1.bf16.msra.mxu0 %v855
    %915 = vmatprep.subr.bf16.mxu0 0
    %916 = vmatpush1.bf16.msra.mxu0 %v856
    %917 = vmatprep.subr.bf16.mxu0 0
    %918 = vmatpush1.bf16.msra.mxu0 %v857
    %919 = vmatprep.subr.bf16.mxu0 0
    %920 = vmatpush1.bf16.msra.mxu0 %v858
    %921 = vmatprep.subr.bf16.mxu0 0
    %922 = vmatpush1.bf16.msra.mxu0 %v859
    %923 = vmatprep.subr.bf16.mxu0 0
    %924 = vmatpush1.bf16.msra.mxu0 %v860
    %925 = vmatprep.subr.bf16.mxu0 0
    %926 = vmatpush1.bf16.msra.mxu0 %v861
    %927 = vmatprep.subr.bf16.mxu0 0
    %928 = vmatpush1.bf16.msra.mxu0 %v862
    %929 = vmatprep.subr.bf16.mxu0 0
    %930 = vmatpush1.bf16.msra.mxu0 %v863
    %931 = vmatprep.mubr.bf16.mxu0 %v896
    %932 = vmatmul.mubr.bf16.gmra.mrb[0].mxu0 %v889
    %v933 = vpop.f32.mrb[0].mxu0
    %v934 = vadd.f32 %v873, %v933
    %v935 = vpop.f32.mrb[0].mxu0
    %v936 = vpop.f32.mrb[0].mxu0
    %v937 = vpop.f32.mrb[0].mxu0
    %938 = vdwg.mxu0
    %939 = vst [vmem:[#allocation3] sm:$0x1] %v934
    // Predicated region
    $region30: #{tpu_custom_call.1} parent=1 // pred_check
      _
    $region31: #{tpu_custom_call.1} parent=1 // pred_check_branch
      %941 = sbr.rel (0) target = $region33
    $region32: #{tpu_custom_call.1} parent=1 // pred_region
      %s943 = ssub.s32 16, 16
      %944 = vsyncadd [#allocation4], %s943
      %s946 = sshll.u32 [#allocation3], 4
      %s947 = int_to_ptr.vmem [resolvable:$true] %s946
      %949 = dma.vmem_to_hbm [thread:$0]  %s947, 16, %s7, [#allocation4]
    $region33: #{tpu_custom_call.1} parent=1 // pred_fallthru
      _
    // Predicated region
    $region34: #{tpu_custom_call.1} parent=1 // pred_check
      _
    $region35: #{tpu_custom_call.1} parent=1 // pred_check_branch
      %951 = sbr.rel (0) target = $region37
    $region36: #{tpu_custom_call.1} parent=1 // pred_region
      %952 = dma.done [#allocation4], 16
    $region37: #{tpu_custom_call.1} parent=1 // pred_fallthru
      _
    %953 = vsyncpa [#allocation4], 1

</llo_original>
